<compile_context>
chip_gen: v5e
topology: v5e:2x2
jax: 0.10.0
libtpu: 0.0.40
codegen_flags: <defaults>
</compile_context>

<pallas_src>
import jax
import jax.numpy as jnp
from jax import lax
from jax.experimental import pallas as pl
from jax.experimental.pallas import tpu as pltpu


def _cdiv(a, b):
    return -(-a // b)


def _pick_tiles(hw, c, itemsize, budget_bytes=8 * 1024 * 1024):
    """Spatial tile tn (multiple of 128, ~1024 preferred) and channel tile tc."""
    if hw < 128:
        tn = hw                                   # block == full array dim
    else:
        tn = min(1024, (hw // 128) * 128)
    # Keep the double-buffered (tc, tn) x-block within budget by tiling the
    # channel axis rather than shrinking the spatial tile (HBM burst size).
    max_rows = max(8, budget_bytes // (2 * tn * itemsize))
    if c <= max_rows:
        return c, tn
    tc = 8
    d = 8
    while d <= min(c, max_rows):
        if c % d == 0:
            tc = d
        d += 8
    return tc, tn


def _vmem_capacity_bytes():
    try:
        return int(pltpu.get_tpu_info().vmem_capacity_bytes)
    except Exception:
        return 64 * 1024 * 1024                   # conservative: v7x per-TC VMEM


def channel_attention(x, w1, w2):
    """sigmoid(MLP(avg_pool(x)) + MLP(max_pool(x))) for x of shape (B, C, H, W).

    w1: (C // ratio, C)  -- first 1x1 conv weight (bias-free), squeezed
    w2: (C, C // ratio)  -- second 1x1 conv weight (bias-free), squeezed
    Returns (B, C, 1, 1), matching the PyTorch module.
    """
    B, C, H, W = x.shape
    HW = H * W
    Cr = w1.shape[0]
    itemsize = jnp.dtype(x.dtype).itemsize

    x3 = x.reshape(B, C, HW)
    tc, tn = _pick_tiles(HW, C, itemsize)
    n_c = _cdiv(C, tc)
    nt = _cdiv(HW, tn)                  # real spatial tiles
    n_split = 2 if nt >= 2 else 1       # spatial split -> work for 2nd TC (v7x)
    n_j = _cdiv(nt, n_split)            # spatial tiles per split
    inv_hw = 1.0 / float(HW)

    # ---------------- stage 1: streaming sum / max pooling ----------------
    def pool_kernel(x_ref, psum_ref, pmax_ref):
        s = pl.program_id(0)
        j = pl.program_id(3)

        @pl.when(j == 0)
        def _():
            psum_ref[0, 0] = jnp.zeros_like(psum_ref[0, 0])
            pmax_ref[0, 0] = jnp.full_like(pmax_ref[0, 0], -jnp.inf)

        # Mask tail / padding tiles against the true spatial extent.
        start = (s * n_j + j) * tn
        lane = lax.broadcasted_iota(jnp.int32, (tc, tn), 1)
        valid = (start + lane) < HW

        xt = x_ref[0]                                             # (tc, tn)
        xs = jnp.where(valid, xt, jnp.zeros((), xt.dtype))
        psum_ref[0, 0] += jnp.sum(xs, axis=-1, keepdims=True, dtype=jnp.float32)
        xm = jnp.where(valid, xt, jnp.full((), -jnp.inf, xt.dtype))
        pmax_ref[0, 0] = jnp.maximum(
            pmax_ref[0, 0],
            jnp.max(xm, axis=-1, keepdims=True).astype(jnp.float32))

    def x_map(s, b, c, j):
        # Clamp so a split's padding step re-reads the last real tile (it is
        # fully masked in-kernel) instead of pointing a DMA out of bounds.
        return (b, c, jnp.minimum(s * n_j + j, nt - 1))

    block_bytes = tc * tn * itemsize
    vmem_limit = int(min(int(0.75 * _vmem_capacity_bytes()),
                         max(32 * 1024 * 1024, 4 * block_bytes)))

    pool_cost = pl.CostEstimate(
        flops=int(2 * B * C * HW),
        transcendentals=0,
        bytes_accessed=int(x3.size * itemsize + 2 * n_split * B * C * 4),
    )

    psum, pmax = pl.pallas_call(
        pool_kernel,
        out_shape=(jax.ShapeDtypeStruct((n_split, B, C, 1), jnp.float32),
                   jax.ShapeDtypeStruct((n_split, B, C, 1), jnp.float32)),
        grid_spec=pltpu.PrefetchScalarGridSpec(
            num_scalar_prefetch=0,
            grid=(n_split, B, n_c, n_j),
            in_specs=[pl.BlockSpec((1, tc, tn), x_map)],
            out_specs=[
                pl.BlockSpec((1, 1, tc, 1), lambda s, b, c, j: (s, b, c, 0)),
                pl.BlockSpec((1, 1, tc, 1), lambda s, b, c, j: (s, b, c, 0)),
            ],
        ),
        compiler_params=pltpu.CompilerParams(
            dimension_semantics=("parallel", "parallel", "parallel", "arbitrary"),
            vmem_limit_bytes=vmem_limit,
        ),
        cost_estimate=pool_cost,
    )(x3)

    # -------- stage 2: combine partials + shared MLP + sigmoid (tiny) --------
    def mlp_kernel(psum_ref, pmax_ref, w1_ref, w2_ref, o_ref):
        total = psum_ref[0, 0]                                    # (C, 1) f32
        mx = pmax_ref[0, 0]                                       # (C, 1) f32
        if n_split == 2:
            total = total + psum_ref[1, 0]
            mx = jnp.maximum(mx, pmax_ref[1, 0])
        mean = total * inv_hw
        w1f = w1_ref[...].astype(jnp.float32)                     # (Cr, C)
        w2f = w2_ref[...].astype(jnp.float32)                     # (C, Cr)
        # Shared MLP on both pooled vectors; W2 is linear so add the hiddens.
        h = (jnp.maximum(jnp.dot(w1f, mean,
                                 preferred_element_type=jnp.float32), 0.0)
             + jnp.maximum(jnp.dot(w1f, mx,
                                   preferred_element_type=jnp.float32), 0.0))
        y = jnp.dot(w2f, h, preferred_element_type=jnp.float32)   # (C, 1)
        o_ref[0] = (1.0 / (1.0 + jnp.exp(-y))).astype(o_ref.dtype)

    mlp_cost = pl.CostEstimate(
        flops=int(6 * B * C * Cr),
        transcendentals=int(B * C),
        bytes_accessed=int(2 * n_split * B * C * 4
                           + w1.size * jnp.dtype(w1.dtype).itemsize
                           + w2.size * jnp.dtype(w2.dtype).itemsize
                           + B * C * itemsize),
    )

    out = pl.pallas_call(
        mlp_kernel,
        out_shape=jax.ShapeDtypeStruct((B, C, 1), x.dtype),
        grid_spec=pltpu.PrefetchScalarGridSpec(
            num_scalar_prefetch=0,
            grid=(B,),
            in_specs=[
                pl.BlockSpec((n_split, 1, C, 1), lambda b: (0, b, 0, 0)),
                pl.BlockSpec((n_split, 1, C, 1), lambda b: (0, b, 0, 0)),
                pl.BlockSpec((Cr, C), lambda b: (0, 0)),
                pl.BlockSpec((C, Cr), lambda b: (0, 0)),
            ],
            out_specs=pl.BlockSpec((1, C, 1), lambda b: (b, 0, 0)),
        ),
        compiler_params=pltpu.CompilerParams(dimension_semantics=("parallel",)),
        cost_estimate=mlp_cost,
    )(psum, pmax, w1, w2)

    return out.reshape(B, C, 1, 1)


def _reference(x, w1, w2):
    avg = jnp.mean(x, axis=(2, 3))                     # (B, C)
    mx = jnp.max(x, axis=(2, 3))                       # (B, C)

    def mlp(v):
        h = jnp.maximum(jnp.einsum("bc,rc->br", v, w1,
                                   precision=lax.Precision.HIGHEST), 0.0)
        return jnp.einsum("br,cr->bc", h, w2, precision=lax.Precision.HIGHEST)

    B, C = avg.shape
    return jax.nn.sigmoid(mlp(avg) + mlp(mx)).reshape(B, C, 1, 1)


if __name__ == "__main__":
    key = jax.random.PRNGKey(0)

    # Case 1: tiny shapes (single tile, single split).
    # Case 2: HW not divisible by the spatial tile -> masked tail tile, plus
    #         dual spatial split (n_split=2) with one fully-masked padding step
    #         (exercises the v7x dual-TensorCore path and the clamp logic).
    cases = [((2, 64, 16, 16), 16), ((1, 64, 48, 48), 16)]
    for (B, C, H, W), ratio in cases:
        Cr = max(1, C // ratio)
        key, kx, k1, k2 = jax.random.split(key, 4)
        x = jax.random.normal(kx, (B, C, H, W), dtype=jnp.float32)
        # Conv2d(C, C//r, 1, bias=False).weight squeezed -> (Cr, C)
        w1 = jax.random.normal(k1, (Cr, C), dtype=jnp.float32) * 0.05
        # Conv2d(C//r, C, 1, bias=False).weight squeezed -> (C, Cr)
        w2 = jax.random.normal(k2, (C, Cr), dtype=jnp.float32) * 0.05

        out = jax.block_until_ready(channel_attention(x, w1, w2))
        ref = _reference(x, w1, w2)

        assert out.shape == (B, C, 1, 1)
        err = float(jnp.max(jnp.abs(out - ref)))
        # Tolerance covers MXU f32 rounding vs HIGHEST-precision XLA reference.
        assert jnp.allclose(out, ref, atol=2e-3, rtol=2e-3), err

    print("KERNEL_OK")
</pallas_src>

<mosaic_0001>
module attributes {stable_mosaic.version = 11 : i64} {
  func.func @pool_kernel(%arg0: i32, %arg1: i32, %arg2: i32, %arg3: i32, %arg4: memref<1x64x256xf32, #tpu.memory_space<vmem>>, %arg5: memref<1x1x64x1xf32, #tpu.memory_space<vmem>>, %arg6: memref<1x1x64x1xf32, #tpu.memory_space<vmem>>) attributes {dimension_semantics = [#tpu.dimension_semantics<parallel>, #tpu.dimension_semantics<parallel>, #tpu.dimension_semantics<parallel>, #tpu.dimension_semantics<arbitrary>], iteration_bounds = array<i64: 1, 2, 1, 1>, scalar_prefetch = 0 : i64, scratch_operands = 0 : i64, tpu.core_type = #tpu.core_type<tc>, window_params = [{transform_indices = @transform_0, window_bounds = array<i64: 1, 64, 256>}, {transform_indices = @transform_1, window_bounds = array<i64: 1, 1, 64, 1>}, {transform_indices = @transform_2, window_bounds = array<i64: 1, 1, 64, 1>}]} {
    %c0_i32 = arith.constant 0 : i32
    %0 = arith.cmpi eq, %arg3, %c0_i32 : i32
    %1 = arith.extui %0 : i1 to i32
    %c0_i32_0 = arith.constant 0 : i32
    %2 = arith.cmpi ne, %1, %c0_i32_0 : i32
    scf.if %2 {
      %cst_23 = arith.constant 0.000000e+00 : f32
      %33 = vector.broadcast %cst_23 : f32 to vector<64x1xf32>
      %c0_24 = arith.constant 0 : index
      %c0_25 = arith.constant 0 : index
      %c0_26 = arith.constant 0 : index
      %c0_27 = arith.constant 0 : index
      %34 = vector.load %arg5[%c0_24, %c0_25, %c0_26, %c0_27] : memref<1x1x64x1xf32, #tpu.memory_space<vmem>>, vector<1x1x64x1xf32>
      %35 = vector.shape_cast %34 : vector<1x1x64x1xf32> to vector<64x1xf32>
      %36 = vector.shape_cast %33 : vector<64x1xf32> to vector<1x1x64x1xf32>
      tpu.vector_store %arg5[%c0_24, %c0_25, %c0_26, %c0_27], %36 {strides = array<i32>} : memref<1x1x64x1xf32, #tpu.memory_space<vmem>>, vector<1x1x64x1xf32>,
      %cst_28 = arith.constant 0xFF800000 : f32
      %37 = vector.broadcast %cst_28 : f32 to vector<64x1xf32>
      %c0_29 = arith.constant 0 : index
      %c0_30 = arith.constant 0 : index
      %c0_31 = arith.constant 0 : index
      %c0_32 = arith.constant 0 : index
      %38 = vector.load %arg6[%c0_29, %c0_30, %c0_31, %c0_32] : memref<1x1x64x1xf32, #tpu.memory_space<vmem>>, vector<1x1x64x1xf32>
      %39 = vector.shape_cast %38 : vector<1x1x64x1xf32> to vector<64x1xf32>
      %40 = vector.shape_cast %37 : vector<64x1xf32> to vector<1x1x64x1xf32>
      tpu.vector_store %arg6[%c0_29, %c0_30, %c0_31, %c0_32], %40 {strides = array<i32>} : memref<1x1x64x1xf32, #tpu.memory_space<vmem>>, vector<1x1x64x1xf32>,
    } else {
    }
    %c1_i32 = arith.constant 1 : i32
    %3 = arith.muli %arg0, %c1_i32 : i32
    %4 = arith.addi %3, %arg3 : i32
    %c256_i32 = arith.constant 256 : i32
    %5 = arith.muli %4, %c256_i32 : i32
    %6 = tpu.iota {dimensions = array<i32: 1>} : vector<64x256xi32>
    %7 = vector.broadcast %5 : i32 to vector<64x256xi32>
    %8 = arith.addi %7, %6 : vector<64x256xi32>
    %c256_i32_1 = arith.constant 256 : i32
    %9 = vector.broadcast %c256_i32_1 : i32 to vector<64x256xi32>
    %10 = arith.cmpi slt, %8, %9 : vector<64x256xi32>
    %c0 = arith.constant 0 : index
    %c0_2 = arith.constant 0 : index
    %c0_3 = arith.constant 0 : index
    %11 = vector.load %arg4[%c0, %c0_2, %c0_3] : memref<1x64x256xf32, #tpu.memory_space<vmem>>, vector<1x64x256xf32>
    %12 = vector.shape_cast %11 : vector<1x64x256xf32> to vector<64x256xf32>
    %cst = arith.constant 0.000000e+00 : f32
    %13 = vector.broadcast %cst : f32 to vector<64x256xf32>
    %14 = arith.select %10, %12, %13 : vector<64x256xi1>, vector<64x256xf32>
    %c0_4 = arith.constant 0 : index
    %c0_5 = arith.constant 0 : index
    %c0_6 = arith.constant 0 : index
    %c0_7 = arith.constant 0 : index
    %15 = vector.load %arg5[%c0_4, %c0_5, %c0_6, %c0_7] : memref<1x1x64x1xf32, #tpu.memory_space<vmem>>, vector<1x1x64x1xf32>
    %16 = vector.shape_cast %15 : vector<1x1x64x1xf32> to vector<64x1xf32>
    %cst_8 = arith.constant dense<0.000000e+00> : vector<64xf32>
    %17 = vector.multi_reduction <add>, %14, %cst_8 [1] : vector<64x256xf32> to vector<64xf32>
    %18 = vector.shape_cast %17 : vector<64xf32> to vector<64x1xf32>
    %19 = arith.addf %16, %18 : vector<64x1xf32>
    %c0_9 = arith.constant 0 : index
    %c0_10 = arith.constant 0 : index
    %c0_11 = arith.constant 0 : index
    %c0_12 = arith.constant 0 : index
    %20 = vector.load %arg5[%c0_9, %c0_10, %c0_11, %c0_12] : memref<1x1x64x1xf32, #tpu.memory_space<vmem>>, vector<1x1x64x1xf32>
    %21 = vector.shape_cast %20 : vector<1x1x64x1xf32> to vector<64x1xf32>
    %22 = vector.shape_cast %19 : vector<64x1xf32> to vector<1x1x64x1xf32>
    tpu.vector_store %arg5[%c0_9, %c0_10, %c0_11, %c0_12], %22 {strides = array<i32>} : memref<1x1x64x1xf32, #tpu.memory_space<vmem>>, vector<1x1x64x1xf32>,
    %cst_13 = arith.constant 0xFF800000 : f32
    %23 = vector.broadcast %cst_13 : f32 to vector<64x256xf32>
    %24 = arith.select %10, %12, %23 : vector<64x256xi1>, vector<64x256xf32>
    %c0_14 = arith.constant 0 : index
    %c0_15 = arith.constant 0 : index
    %c0_16 = arith.constant 0 : index
    %c0_17 = arith.constant 0 : index
    %25 = vector.load %arg6[%c0_14, %c0_15, %c0_16, %c0_17] : memref<1x1x64x1xf32, #tpu.memory_space<vmem>>, vector<1x1x64x1xf32>
    %26 = vector.shape_cast %25 : vector<1x1x64x1xf32> to vector<64x1xf32>
    %cst_18 = arith.constant dense<0xFF800000> : vector<64xf32>
    %27 = vector.multi_reduction <maximumf>, %24, %cst_18 [1] : vector<64x256xf32> to vector<64xf32>
    %28 = vector.shape_cast %27 : vector<64xf32> to vector<64x1xf32>
    %29 = arith.maximumf %26, %28 : vector<64x1xf32>
    %c0_19 = arith.constant 0 : index
    %c0_20 = arith.constant 0 : index
    %c0_21 = arith.constant 0 : index
    %c0_22 = arith.constant 0 : index
    %30 = vector.load %arg6[%c0_19, %c0_20, %c0_21, %c0_22] : memref<1x1x64x1xf32, #tpu.memory_space<vmem>>, vector<1x1x64x1xf32>
    %31 = vector.shape_cast %30 : vector<1x1x64x1xf32> to vector<64x1xf32>
    %32 = vector.shape_cast %29 : vector<64x1xf32> to vector<1x1x64x1xf32>
    tpu.vector_store %arg6[%c0_19, %c0_20, %c0_21, %c0_22], %32 {strides = array<i32>} : memref<1x1x64x1xf32, #tpu.memory_space<vmem>>, vector<1x1x64x1xf32>,
    return
  }
  func.func @transform_0(%arg0: i32, %arg1: i32, %arg2: i32, %arg3: i32) -> (i32, i32, i32) {
    %c1_i32 = arith.constant 1 : i32
    %0 = arith.muli %arg0, %c1_i32 : i32
    %1 = arith.addi %0, %arg3 : i32
    %c0_i32 = arith.constant 0 : i32
    %2 = arith.minsi %1, %c0_i32 : i32
    %c0_i32_0 = arith.constant 0 : i32
    return %arg1, %arg2, %2 : i32, i32, i32
  }
  func.func @transform_1(%arg0: i32, %arg1: i32, %arg2: i32, %arg3: i32) -> (i32, i32, i32, i32) {
    %c0_i32 = arith.constant 0 : i32
    %c0_i32_0 = arith.constant 0 : i32
    return %arg0, %arg1, %arg2, %c0_i32 : i32, i32, i32, i32
  }
  func.func @transform_2(%arg0: i32, %arg1: i32, %arg2: i32, %arg3: i32) -> (i32, i32, i32, i32) {
    %c0_i32 = arith.constant 0 : i32
    %c0_i32_0 = arith.constant 0 : i32
    return %arg0, %arg1, %arg2, %c0_i32 : i32, i32, i32, i32
  }
}

</mosaic_0001>

<llo_original>
// kernel: tpu_custom_call.1
$region0: #{tpu_custom_call.1}
  #allocation0 [shape = 'u32[]', space=smem, size = 0x4, offset = 0x4, fixed_abs, tag = 'smem constant byte address 0x4 - core index']
  #allocation1 [shape = 'u32[72,128]{1,0:T(1,128)}', space=vmem, size = 0x9000, scoped, tag = 'internal scratch']
  %s0 = inlined_call_operand.hbm [shape: f32[2,64,256], index: 0, kind: input, shape index: {}]
  %s1 = inlined_call_operand.vmem [shape: f32[1,2,64,1], index: 1, kind: output, shape index: {0}]
  %s2 = inlined_call_operand.vmem [shape: f32[1,2,64,1], index: 2, kind: output, shape index: {1}]
  %3 = xla_tuple %s1, %s2
  %s4 = sld [smem:[#allocation0]]
  $region53: #{tpu_custom_call.1} parent=0
    _
  %s6 = ssub.s32 1, %s4
  %s7 = scalar_select 0, %s6, %s4
  $region1: #{tpu_custom_call.1} parent=0
    #allocation2 [shape = 'u8[131072]{0}', space=vmem, size = 0x20000, scoped, tag = 'input window, operand 0']
    #allocation3 [shape = 's32[2]{0}', space=sflag, size = 0x8, scoped, tag = 'scoped memory for tpu_custom_call.1']
    %8 = vsyncpa [#allocation3], 0
    %s9 = scalar_lea.sflag [#allocation3], 1
    %10 = vsyncpa %s9, 0
    loop: start=0, step=1, limit=4
    $region2: #{tpu_custom_call.1} parent=1 // loop_pre_header
      _
    $region3: #{tpu_custom_call.1} parent=1 // loop_header
      %s12 = sphi 0, %s16
      %p13 = scmp.ge.s32.totalorder %s12, 4
      %s19 = sphi 0, %s45
      %s20 = sphi 0, %s41
      %s21 = sphi 0, %s37
      %s22 = sphi 0, %s33
      %s23 = sphi 0, %s19
      %s24 = sphi 0, %s20
      %s25 = sphi 0, %s21
      %s26 = sphi 0, %s22
      %s27 = sphi 0, %s23
      %s28 = sphi 0, %s24
      %s29 = sphi 0, %s25
      %s30 = sphi 0, %s26
      %s58 = sphi 0, %s60
      %s61 = sphi 0, %s58
      %s62 = sphi 0, %s61
      %s78 = sphi 0, %s62
      %s88 = sphi 0, %s90
      %s91 = sphi 0, %s88
      %s92 = sphi 0, %s91
      %s108 = sphi 0, %s92
      %s118 = sphi 0, %s120
      %s121 = sphi 0, %s118
      %s122 = sphi 0, %s121
      %s138 = sphi 0, %s122
    $region4: #{tpu_custom_call.1} parent=1 // loop_header_branch
      %15 = sbr.rel (%p13) target = $region8
    $region5: #{tpu_custom_call.1} parent=1 // loop_body
      %s17 = ssub.s32 %s12, 1
      %s18 = ssub.s32 %s12, 2
      %s31 = sadd.s32 1, %s22
      %p32 = scmp.ge.s32.totalorder %s31, 1
      %s33 = scalar_select %p32, 0, %s31
      %s34 = sadd.s32 1, %s21
      %s35 = scalar_select %p32, %s34, %s21
      %p36 = scmp.ge.s32.totalorder %s35, 1
      %s37 = scalar_select %p36, 0, %s35
      %s38 = sadd.s32 1, %s20
      %s39 = scalar_select %p36, %s38, %s20
      %p40 = scmp.ge.s32.totalorder %s39, 2
      %s41 = scalar_select %p40, 0, %s39
      %s42 = sadd.s32 1, %s19
      %s43 = scalar_select %p40, %s42, %s19
      %p44 = scmp.ge.s32.totalorder %s43, 1
      %s45 = scalar_select %p44, 0, %s43
      %s46 = sadd.s32 %s19, %s22
      %p47 = scmp.lt.s32.totalorder %s46, 0
      %s48 = scalar_select %p47, %s46, 0
      %s49 = sadd.s32 %s45, %s33
      %p50 = scmp.lt.s32.totalorder %s49, 0
      %s51 = scalar_select %p50, %s49, 0
      %s52 = ssub.s32 %s20, %s41
      %s53 = ssub.s32 %s21, %s37
      %s54 = sor.u32 %s52, %s53
      %s55 = ssub.s32 %s48, %s51
      %s56 = sor.u32 %s54, %s55
      %p57 = scmp.eq.s32.totalorder %s56, 0
      %s59 = sadd.s32 %s58, 1
      %s60 = scalar_select %p57, %s58, %s59
      %p63 = pneg %p57
      %p64 = scmp.eq.s32.totalorder %s12, 1
      %p65 = por %p63, %p64
      %p66 = scmp.ne.s32.totalorder %s58, %s61
      %p67 = scmp.eq.s32.totalorder %s12, 0
      %p68 = por %p66, %p67
      %p69 = scmp.ne.s32.totalorder %s58, %s61
      %p70 = scmp.eq.s32.totalorder %s17, 1
      %p71 = por %p69, %p70
      %p72 = scmp.ne.s32.totalorder %s61, %s62
      %p73 = scmp.eq.s32.totalorder %s17, 0
      %p74 = por %p72, %p73
      %p75 = scmp.ne.s32.totalorder %s61, %s62
      %p76 = scmp.eq.s32.totalorder %s18, 1
      %p77 = por %p75, %p76
      %p79 = scmp.ne.s32.totalorder %s62, %s78
      %p80 = scmp.eq.s32.totalorder %s18, 0
      %p81 = por %p79, %p80
      %s82 = ssub.s32 %s19, %s45
      %s83 = ssub.s32 %s20, %s41
      %s84 = sor.u32 %s82, %s83
      %s85 = ssub.s32 %s21, %s37
      %s86 = sor.u32 %s84, %s85
      %p87 = scmp.eq.s32.totalorder %s86, 0
      %s89 = sadd.s32 %s88, 1
      %s90 = scalar_select %p87, %s88, %s89
      %p93 = pneg %p87
      %p94 = scmp.eq.s32.totalorder %s12, 1
      %p95 = por %p93, %p94
      %p96 = scmp.ne.s32.totalorder %s88, %s91
      %p97 = scmp.eq.s32.totalorder %s12, 0
      %p98 = por %p96, %p97
      %p99 = scmp.ne.s32.totalorder %s88, %s91
      %p100 = scmp.eq.s32.totalorder %s17, 1
      %p101 = por %p99, %p100
      %p102 = scmp.ne.s32.totalorder %s91, %s92
      %p103 = scmp.eq.s32.totalorder %s17, 0
      %p104 = por %p102, %p103
      %p105 = scmp.ne.s32.totalorder %s91, %s92
      %p106 = scmp.eq.s32.totalorder %s18, 1
      %p107 = por %p105, %p106
      %p109 = scmp.ne.s32.totalorder %s92, %s108
      %p110 = scmp.eq.s32.totalorder %s18, 0
      %p111 = por %p109, %p110
      %s112 = ssub.s32 %s19, %s45
      %s113 = ssub.s32 %s20, %s41
      %s114 = sor.u32 %s112, %s113
      %s115 = ssub.s32 %s21, %s37
      %s116 = sor.u32 %s114, %s115
      %p117 = scmp.eq.s32.totalorder %s116, 0
      %s119 = sadd.s32 %s118, 1
      %s120 = scalar_select %p117, %s118, %s119
      %p123 = pneg %p117
      %p124 = scmp.eq.s32.totalorder %s12, 1
      %p125 = por %p123, %p124
      %p126 = scmp.ne.s32.totalorder %s118, %s121
      %p127 = scmp.eq.s32.totalorder %s12, 0
      %p128 = por %p126, %p127
      %p129 = scmp.ne.s32.totalorder %s118, %s121
      %p130 = scmp.eq.s32.totalorder %s17, 1
      %p131 = por %p129, %p130
      %p132 = scmp.ne.s32.totalorder %s121, %s122
      %p133 = scmp.eq.s32.totalorder %s17, 0
      %p134 = por %p132, %p133
      %p135 = scmp.ne.s32.totalorder %s121, %s122
      %p136 = scmp.eq.s32.totalorder %s18, 1
      %p137 = por %p135, %p136
      %p139 = scmp.ne.s32.totalorder %s122, %s138
      %p140 = scmp.eq.s32.totalorder %s18, 0
      %p141 = por %p139, %p140
      %p142 = scmp.le.s32.totalorder 1, %s12
      %p143 = scmp.lt.s32.totalorder %s12, 3
      %p144 = pnand %p142, %p143
      %p145 = pneg %p144
      // Predicated region
      $region9: #{tpu_custom_call.1} parent=5 // pred_check
        _
      $region10: #{tpu_custom_call.1} parent=5 // pred_check_branch
        %147 = sbr.rel (%p144) target = $region12
      $region11: #{tpu_custom_call.1} parent=5 // pred_region
        %s148 = ssub.s32 %s12, 1
      $region12: #{tpu_custom_call.1} parent=5 // pred_fallthru
        _
      %p149 = scmp.lt.s32.totalorder %s12, 2
      // Predicated region
      $region13: #{tpu_custom_call.1} parent=5 // pred_check
        %p150 = pneg %p149
      $region14: #{tpu_custom_call.1} parent=5 // pred_check_branch
        %152 = sbr.rel (%p150) target = $region16
      $region15: #{tpu_custom_call.1} parent=5 // pred_region
        // Predicated region
        $region17: #{tpu_custom_call.1} parent=15 // pred_check
          %p153 = pneg %p68
        $region18: #{tpu_custom_call.1} parent=15 // pred_check_branch
          %155 = sbr.rel (%p153) target = $region20
        $region19: #{tpu_custom_call.1} parent=15 // pred_region
          %s156 = sand.u32 %s58, 1
          %s157 = scalar_lea.sflag [#allocation3], %s156
          %s158 = sand.u32 %s58, 1
          %s159 = smul.addr %s158, 128
          %s160 = scalar_lea.vmem [#allocation2], %s159
          %s161 = sadd.s32 %s19, %s22
          %p162 = scmp.lt.s32.totalorder %s161, 0
          %s163 = scalar_select %p162, %s161, 0
          %s164 = smul.u32 8, %s21
          %s165 = smul.u32 2, %s163
          %167 = vsyncadd %s157, 0
          %s168 = smul.addr %s164, 2
          %s169 = sadd.s32 %s165, %s168
          %s170 = smul.addr %s20, 16
          %s171 = sadd.s32 %s169, %s170
          %s172 = smul.addr %s171, 8
          %s173 = scalar_lea.hbm %s0, %s172
          %s174 = sshll.u32 %s173, 4
          %s175 = int_to_ptr.hbm [resolvable:$true] %s174
          %s176 = sshll.u32 %s160, 4
          %s177 = int_to_ptr.vmem [resolvable:$true] %s176
          %182 = dma.hbm_to_vmem [thread:$0]  %s175, 2048, %s177, %s157, 256, 256, 16
        $region20: #{tpu_custom_call.1} parent=15 // pred_fallthru
          _
      $region16: #{tpu_custom_call.1} parent=5 // pred_fallthru
        _
      %p183 = scmp.le.s32.totalorder 1, %s12
      %p184 = scmp.lt.s32.totalorder %s12, 3
      %p185 = pnand %p183, %p184
      %p186 = pneg %p185
      // Predicated region
      $region21: #{tpu_custom_call.1} parent=5 // pred_check
        _
      $region22: #{tpu_custom_call.1} parent=5 // pred_check_branch
        %188 = sbr.rel (%p185) target = $region24
      $region23: #{tpu_custom_call.1} parent=5 // pred_region
        %s189 = ssub.s32 %s12, 1
        %s190 = sand.u32 %s61, 1
        %s191 = scalar_lea.sflag [#allocation3], %s190
        %s192 = sand.u32 %s61, 1
        %s193 = smul.addr %s192, 128
        %s194 = scalar_lea.vmem [#allocation2], %s193
        // Predicated region
        $region25: #{tpu_custom_call.1} parent=23 // pred_check
          %p195 = pneg %p74
        $region26: #{tpu_custom_call.1} parent=23 // pred_check_branch
          %197 = sbr.rel (%p195) target = $region28
        $region27: #{tpu_custom_call.1} parent=23 // pred_region
          %199 = dma.done %s191, 2048
        $region28: #{tpu_custom_call.1} parent=23 // pred_fallthru
          _
        %s200 = sand.u32 %s61, 1
        %s201 = scalar_lea.sflag [#allocation3], %s200
        %s202 = sand.u32 %s61, 1
        %s203 = smul.addr %s202, 128
        %s204 = scalar_lea.vmem [#allocation2], %s203
        %p205 = pneg %p74
        %p206 = pneg %p71
        %p207 = pneg %p104
        %p208 = pneg %p101
        %s209 = smul.u32 8, %s25
        %p210 = scmp.lt.s32.totalorder %s23, 0
        %s211 = scalar_select %p210, %s23, 0
        %p212 = scmp.lt.s32.totalorder %s24, 1
        %s213 = scalar_select %p212, %s24, 1
        %p214 = scmp.lt.s32.totalorder %s209, 7
        %s215 = scalar_select %p214, %s209, 7
        %s216 = smul.addr %s213, 8
        %s217 = sadd.s32 %s215, %s216
        %s218 = smul.addr %s211, 16
        %s219 = sadd.s32 %s217, %s218
        %s220 = smul.addr %s219, 8
        %s221 = scalar_lea.vmem %s1, %s220
        %p222 = pneg %p134
        %p223 = pneg %p131
        %s224 = smul.u32 8, %s25
        %p225 = scmp.lt.s32.totalorder %s23, 0
        %s226 = scalar_select %p225, %s23, 0
        %p227 = scmp.lt.s32.totalorder %s24, 1
        %s228 = scalar_select %p227, %s24, 1
        %p229 = scmp.lt.s32.totalorder %s224, 7
        %s230 = scalar_select %p229, %s224, 7
        %s231 = smul.addr %s228, 8
        %s232 = sadd.s32 %s230, %s231
        %s233 = smul.addr %s226, 16
        %s234 = sadd.s32 %s232, %s233
        %s235 = smul.addr %s234, 8
        %s236 = scalar_lea.vmem %s2, %s235
        %s237 = sadd.s32 %s23, %s26
        %p238 = scmp.lt.s32.totalorder %s237, 0
        %s239 = scalar_select %p238, %s237, 0
        %s240 = smul.u32 8, %s25
        %s241 = smul.u32 2, %s239
        %s242 = smul.u32 8, %s25
        %p243 = scmp.lt.s32.totalorder %s23, 0
        %s244 = scalar_select %p243, %s23, 0
        %p245 = scmp.lt.s32.totalorder %s24, 1
        %s246 = scalar_select %p245, %s24, 1
        %p247 = scmp.lt.s32.totalorder %s242, 7
        %s248 = scalar_select %p247, %s242, 7
        %s249 = smul.addr %s246, 8
        %s250 = sadd.s32 %s248, %s249
        %s251 = smul.addr %s244, 16
        %s252 = sadd.s32 %s250, %s251
        %s253 = smul.addr %s252, 8
        %s254 = scalar_lea.vmem %s1, %s253
        %s255 = smul.u32 8, %s25
        %s256 = smul.u32 8, %s25
        %p257 = scmp.lt.s32.totalorder %s23, 0
        %s258 = scalar_select %p257, %s23, 0
        %p259 = scmp.lt.s32.totalorder %s24, 1
        %s260 = scalar_select %p259, %s24, 1
        %p261 = scmp.lt.s32.totalorder %s256, 7
        %s262 = scalar_select %p261, %s256, 7
        %s263 = smul.addr %s260, 8
        %s264 = sadd.s32 %s262, %s263
        %s265 = smul.addr %s258, 16
        %s266 = sadd.s32 %s264, %s265
        %s267 = smul.addr %s266, 8
        %s268 = scalar_lea.vmem %s2, %s267
        %s269 = smul.u32 8, %s25
        %p270 = scmp.eq.s32.totalorder %s26, 0
        // Predicated region
        $region29: #{tpu_custom_call.1} parent=23 // pred_check
          %p271 = pneg %p270
        $region30: #{tpu_custom_call.1} parent=23 // pred_check_branch
          %273 = sbr.rel (%p271) target = $region32
        $region31: #{tpu_custom_call.1} parent=23 // pred_region
          %vm274 = vcmask 7168
          %275 = vst.msk [vmem:[%s254] sm:$0xff] %vm274, 0.0
          %276 = vst.msk [vmem:[%s254 + $0x8] sm:$0xff] %vm274, 0.0
          %277 = vst.msk [vmem:[%s254 + $0x10] sm:$0xff] %vm274, 0.0
          %278 = vst.msk [vmem:[%s254 + $0x18] sm:$0xff] %vm274, 0.0
          %279 = vst.msk [vmem:[%s254 + $0x20] sm:$0xff] %vm274, 0.0
          %280 = vst.msk [vmem:[%s254 + $0x28] sm:$0xff] %vm274, 0.0
          %281 = vst.msk [vmem:[%s254 + $0x30] sm:$0xff] %vm274, 0.0
          %282 = vst.msk [vmem:[%s254 + $0x38] sm:$0xff] %vm274, 0.0
          %283 = vst.msk [vmem:[%s268] sm:$0xff] %vm274, -inf
          %284 = vst.msk [vmem:[%s268 + $0x8] sm:$0xff] %vm274, -inf
          %285 = vst.msk [vmem:[%s268 + $0x10] sm:$0xff] %vm274, -inf
          %286 = vst.msk [vmem:[%s268 + $0x18] sm:$0xff] %vm274, -inf
          %287 = vst.msk [vmem:[%s268 + $0x20] sm:$0xff] %vm274, -inf
          %288 = vst.msk [vmem:[%s268 + $0x28] sm:$0xff] %vm274, -inf
          %289 = vst.msk [vmem:[%s268 + $0x30] sm:$0xff] %vm274, -inf
          %290 = vst.msk [vmem:[%s268 + $0x38] sm:$0xff] %vm274, -inf
        $region32: #{tpu_custom_call.1} parent=23 // pred_fallthru
          _
        %s291 = sadd.s32 %s23, %s26
        %s292 = smul.u32 %s291, 256
        %v293 = vlaneseq
        %v294 = vand.u32 %v293, 127
        %v295 = vadd.s32 %v294, 128
        %v296 = vstv %s292
        %v297 = vadd.s32 %v296, %v294
        %v298 = vadd.s32 %v296, %v295
        %vm299 = vcmp.lt.s32.totalorder %v297, 256
        %vm300 = vcmp.lt.s32.totalorder %v298, 256
        %v301 = vld [vmem:[%s194] sm:$0xff]
        %v302 = vld [vmem:[%s194 + $0x8] sm:$0xff]
        %v303 = vld [vmem:[%s194 + $0x10] sm:$0xff]
        %v304 = vld [vmem:[%s194 + $0x18] sm:$0xff]
        %v305 = vld [vmem:[%s194 + $0x20] sm:$0xff]
        %v306 = vld [vmem:[%s194 + $0x28] sm:$0xff]
        %v307 = vld [vmem:[%s194 + $0x30] sm:$0xff]
        %v308 = vld [vmem:[%s194 + $0x38] sm:$0xff]
        %v309 = vld [vmem:[%s194 + $0x40] sm:$0xff]
        %v310 = vld [vmem:[%s194 + $0x48] sm:$0xff]
        %v311 = vld [vmem:[%s194 + $0x50] sm:$0xff]
        %v312 = vld [vmem:[%s194 + $0x58] sm:$0xff]
        %v313 = vld [vmem:[%s194 + $0x60] sm:$0xff]
        %v314 = vld [vmem:[%s194 + $0x68] sm:$0xff]
        %v315 = vld [vmem:[%s194 + $0x70] sm:$0xff]
        %v316 = vld [vmem:[%s194 + $0x78] sm:$0xff]
        %v317 = vsel %vm299, %v301, 0.0
        %v318 = vsel %vm300, %v302, 0.0
        %v319 = vsel %vm299, %v303, 0.0
        %v320 = vsel %vm300, %v304, 0.0
        %v321 = vsel %vm299, %v305, 0.0
        %v322 = vsel %vm300, %v306, 0.0
        %v323 = vsel %vm299, %v307, 0.0
        %v324 = vsel %vm300, %v308, 0.0
        %v325 = vsel %vm299, %v309, 0.0
        %v326 = vsel %vm300, %v310, 0.0
        %v327 = vsel %vm299, %v311, 0.0
        %v328 = vsel %vm300, %v312, 0.0
        %v329 = vsel %vm299, %v313, 0.0
        %v330 = vsel %vm300, %v314, 0.0
        %v331 = vsel %vm299, %v315, 0.0
        %v332 = vsel %vm300, %v316, 0.0
        %v333 = vld [vmem:[%s254] sm:$0xff]
        %v334 = vld [vmem:[%s254 + $0x8] sm:$0xff]
        %v335 = vld [vmem:[%s254 + $0x10] sm:$0xff]
        %v336 = vld [vmem:[%s254 + $0x18] sm:$0xff]
        %v337 = vld [vmem:[%s254 + $0x20] sm:$0xff]
        %v338 = vld [vmem:[%s254 + $0x28] sm:$0xff]
        %v339 = vld [vmem:[%s254 + $0x30] sm:$0xff]
        %v340 = vld [vmem:[%s254 + $0x38] sm:$0xff]
        %v341 = vadd.f32 %v317, %v318
        %342 = vadd.xlane.f32.xlu0 %v341
        %v343 = vpop.xlane.xlu0 %342
        %v344 = vadd.f32 %v319, %v320
        %345 = vadd.xlane.f32.xlu0 %v344
        %v346 = vpop.xlane.xlu0 %345
        %v347 = vadd.f32 %v321, %v322
        %348 = vadd.xlane.f32.xlu0 %v347
        %v349 = vpop.xlane.xlu0 %348
        %v350 = vadd.f32 %v323, %v324
        %351 = vadd.xlane.f32.xlu0 %v350
        %v352 = vpop.xlane.xlu0 %351
        %v353 = vadd.f32 %v325, %v326
        %354 = vadd.xlane.f32.xlu0 %v353
        %v355 = vpop.xlane.xlu0 %354
        %v356 = vadd.f32 %v327, %v328
        %357 = vadd.xlane.f32.xlu0 %v356
        %v358 = vpop.xlane.xlu0 %357
        %v359 = vadd.f32 %v329, %v330
        %360 = vadd.xlane.f32.xlu0 %v359
        %v361 = vpop.xlane.xlu0 %360
        %v362 = vadd.f32 %v331, %v332
        %363 = vadd.xlane.f32.xlu0 %v362
        %v364 = vpop.xlane.xlu0 %363
        %v365 = vadd.f32 %v333, %v343
        %v366 = vadd.f32 %v334, %v346
        %v367 = vadd.f32 %v335, %v349
        %v368 = vadd.f32 %v336, %v352
        %v369 = vadd.f32 %v337, %v355
        %v370 = vadd.f32 %v338, %v358
        %v371 = vadd.f32 %v339, %v361
        %v372 = vadd.f32 %v340, %v364
        %vm373 = vcmask 7168
        %374 = vst.msk [vmem:[%s254] sm:$0xff] %vm373, %v365
        %375 = vst.msk [vmem:[%s254 + $0x8] sm:$0xff] %vm373, %v366
        %376 = vst.msk [vmem:[%s254 + $0x10] sm:$0xff] %vm373, %v367
        %377 = vst.msk [vmem:[%s254 + $0x18] sm:$0xff] %vm373, %v368
        %378 = vst.msk [vmem:[%s254 + $0x20] sm:$0xff] %vm373, %v369
        %379 = vst.msk [vmem:[%s254 + $0x28] sm:$0xff] %vm373, %v370
        %380 = vst.msk [vmem:[%s254 + $0x30] sm:$0xff] %vm373, %v371
        %381 = vst.msk [vmem:[%s254 + $0x38] sm:$0xff] %vm373, %v372
        %v382 = vsel %vm299, %v301, -inf
        %v383 = vsel %vm300, %v302, -inf
        %v384 = vsel %vm299, %v303, -inf
        %v385 = vsel %vm300, %v304, -inf
        %v386 = vsel %vm299, %v305, -inf
        %v387 = vsel %vm300, %v306, -inf
        %v388 = vsel %vm299, %v307, -inf
        %v389 = vsel %vm300, %v308, -inf
        %v390 = vsel %vm299, %v309, -inf
        %v391 = vsel %vm300, %v310, -inf
        %v392 = vsel %vm299, %v311, -inf
        %v393 = vsel %vm300, %v312, -inf
        %v394 = vsel %vm299, %v313, -inf
        %v395 = vsel %vm300, %v314, -inf
        %v396 = vsel %vm299, %v315, -inf
        %v397 = vsel %vm300, %v316, -inf
        %v398 = vld [vmem:[%s268] sm:$0xff]
        %v399 = vld [vmem:[%s268 + $0x8] sm:$0xff]
        %v400 = vld [vmem:[%s268 + $0x10] sm:$0xff]
        %v401 = vld [vmem:[%s268 + $0x18] sm:$0xff]
        %v402 = vld [vmem:[%s268 + $0x20] sm:$0xff]
        %v403 = vld [vmem:[%s268 + $0x28] sm:$0xff]
        %v404 = vld [vmem:[%s268 + $0x30] sm:$0xff]
        %v405 = vld [vmem:[%s268 + $0x38] sm:$0xff]
        %v406 = vmax.f32 %v382, %v383
        %407 = vmax.xlane.f32.xlu0 %v406
        %v408 = vpop.xlane.xlu0 %407
        %v409 = vmax.f32 %v384, %v385
        %410 = vmax.xlane.f32.xlu0 %v409
        %v411 = vpop.xlane.xlu0 %410
        %v412 = vmax.f32 %v386, %v387
        %413 = vmax.xlane.f32.xlu0 %v412
        %v414 = vpop.xlane.xlu0 %413
        %v415 = vmax.f32 %v388, %v389
        %416 = vmax.xlane.f32.xlu0 %v415
        %v417 = vpop.xlane.xlu0 %416
        %v418 = vmax.f32 %v390, %v391
        %419 = vmax.xlane.f32.xlu0 %v418
        %v420 = vpop.xlane.xlu0 %419
        %v421 = vmax.f32 %v392, %v393
        %422 = vmax.xlane.f32.xlu0 %v421
        %v423 = vpop.xlane.xlu0 %422
        %v424 = vmax.f32 %v394, %v395
        %425 = vmax.xlane.f32.xlu0 %v424
        %v426 = vpop.xlane.xlu0 %425
        %v427 = vmax.f32 %v396, %v397
        %428 = vmax.xlane.f32.xlu0 %v427
        %v429 = vpop.xlane.xlu0 %428
        %v430 = vmax.f32 %v398, %v408
        %v431 = vmax.f32 %v399, %v411
        %v432 = vmax.f32 %v400, %v414
        %v433 = vmax.f32 %v401, %v417
        %v434 = vmax.f32 %v402, %v420
        %v435 = vmax.f32 %v403, %v423
        %v436 = vmax.f32 %v404, %v426
        %v437 = vmax.f32 %v405, %v429
        %438 = vst.msk [vmem:[%s268] sm:$0xff] %vm373, %v430
        %439 = vst.msk [vmem:[%s268 + $0x8] sm:$0xff] %vm373, %v431
        %440 = vst.msk [vmem:[%s268 + $0x10] sm:$0xff] %vm373, %v432
        %441 = vst.msk [vmem:[%s268 + $0x18] sm:$0xff] %vm373, %v433
        %442 = vst.msk [vmem:[%s268 + $0x20] sm:$0xff] %vm373, %v434
        %443 = vst.msk [vmem:[%s268 + $0x28] sm:$0xff] %vm373, %v435
        %444 = vst.msk [vmem:[%s268 + $0x30] sm:$0xff] %vm373, %v436
        %445 = vst.msk [vmem:[%s268 + $0x38] sm:$0xff] %vm373, %v437
        %s446 = smul.u32 8, %s25
        %p447 = scmp.lt.s32.totalorder %s23, 0
        %s448 = scalar_select %p447, %s23, 0
        %p449 = scmp.lt.s32.totalorder %s24, 1
        %s450 = scalar_select %p449, %s24, 1
        %p451 = scmp.lt.s32.totalorder %s446, 7
        %s452 = scalar_select %p451, %s446, 7
        %s453 = smul.addr %s450, 8
        %s454 = sadd.s32 %s452, %s453
        %s455 = smul.addr %s448, 16
        %s456 = sadd.s32 %s454, %s455
        %s457 = smul.addr %s456, 8
        %s458 = scalar_lea.vmem %s1, %s457
        %s459 = smul.u32 8, %s25
        %p460 = scmp.lt.s32.totalorder %s23, 0
        %s461 = scalar_select %p460, %s23, 0
        %p462 = scmp.lt.s32.totalorder %s24, 1
        %s463 = scalar_select %p462, %s24, 1
        %p464 = scmp.lt.s32.totalorder %s459, 7
        %s465 = scalar_select %p464, %s459, 7
        %s466 = smul.addr %s463, 8
        %s467 = sadd.s32 %s465, %s466
        %s468 = smul.addr %s461, 16
        %s469 = sadd.s32 %s467, %s468
        %s470 = smul.addr %s469, 8
        %s471 = scalar_lea.vmem %s2, %s470
        // Predicated region
        $region33: #{tpu_custom_call.1} parent=23 // pred_check
          %p472 = pneg %p101
        $region34: #{tpu_custom_call.1} parent=23 // pred_check_branch
          %474 = sbr.rel (%p472) target = $region36
        $region35: #{tpu_custom_call.1} parent=23 // pred_region
          %s475 = smul.u32 8, %s25
        $region36: #{tpu_custom_call.1} parent=23 // pred_fallthru
          _
        // Predicated region
        $region37: #{tpu_custom_call.1} parent=23 // pred_check
          %p476 = pneg %p131
        $region38: #{tpu_custom_call.1} parent=23 // pred_check_branch
          %478 = sbr.rel (%p476) target = $region40
        $region39: #{tpu_custom_call.1} parent=23 // pred_region
          %s479 = smul.u32 8, %s25
        $region40: #{tpu_custom_call.1} parent=23 // pred_fallthru
          _
      $region24: #{tpu_custom_call.1} parent=5 // pred_fallthru
        _
      %p480 = scmp.le.s32.totalorder 2, %s12
      // Predicated region
      $region41: #{tpu_custom_call.1} parent=5 // pred_check
        %p481 = pneg %p480
      $region42: #{tpu_custom_call.1} parent=5 // pred_check_branch
        %483 = sbr.rel (%p481) target = $region44
      $region43: #{tpu_custom_call.1} parent=5 // pred_region
        %s484 = ssub.s32 %s12, 2
        // Predicated region
        $region45: #{tpu_custom_call.1} parent=43 // pred_check
          %p485 = pneg %p107
        $region46: #{tpu_custom_call.1} parent=43 // pred_check_branch
          %487 = sbr.rel (%p485) target = $region48
        $region47: #{tpu_custom_call.1} parent=43 // pred_region
          %s488 = smul.u32 8, %s29
          %p489 = scmp.lt.s32.totalorder %s27, 0
          %s490 = scalar_select %p489, %s27, 0
          %p491 = scmp.lt.s32.totalorder %s28, 1
          %s492 = scalar_select %p491, %s28, 1
          %p493 = scmp.lt.s32.totalorder %s488, 7
          %s494 = scalar_select %p493, %s488, 7
          %s495 = smul.addr %s492, 8
          %s496 = sadd.s32 %s494, %s495
          %s497 = smul.addr %s490, 16
          %s498 = sadd.s32 %s496, %s497
          %s499 = smul.addr %s498, 8
          %s500 = scalar_lea.vmem %s1, %s499
        $region48: #{tpu_custom_call.1} parent=43 // pred_fallthru
          _
        // Predicated region
        $region49: #{tpu_custom_call.1} parent=43 // pred_check
          %p501 = pneg %p137
        $region50: #{tpu_custom_call.1} parent=43 // pred_check_branch
          %503 = sbr.rel (%p501) target = $region52
        $region51: #{tpu_custom_call.1} parent=43 // pred_region
          %s504 = smul.u32 8, %s29
          %p505 = scmp.lt.s32.totalorder %s27, 0
          %s506 = scalar_select %p505, %s27, 0
          %p507 = scmp.lt.s32.totalorder %s28, 1
          %s508 = scalar_select %p507, %s28, 1
          %p509 = scmp.lt.s32.totalorder %s504, 7
          %s510 = scalar_select %p509, %s504, 7
          %s511 = smul.addr %s508, 8
          %s512 = sadd.s32 %s510, %s511
          %s513 = smul.addr %s506, 16
          %s514 = sadd.s32 %s512, %s513
          %s515 = smul.addr %s514, 8
          %s516 = scalar_lea.vmem %s2, %s515
        $region52: #{tpu_custom_call.1} parent=43 // pred_fallthru
          _
      $region44: #{tpu_custom_call.1} parent=5 // pred_fallthru
        _
    $region6: #{tpu_custom_call.1} parent=1 // loop_footer
      %s16 = sadd.s32 1, %s12
    $region7: #{tpu_custom_call.1} parent=1 // loop_footer_branch
      %11 = sbr.rel target = $region3
    $region8: #{tpu_custom_call.1} parent=1 // loop_exit
      _
    %517 = vsyncpa [#allocation3], 1
    %s518 = scalar_lea.sflag [#allocation3], 1
    %519 = vsyncpa %s518, 1

</llo_original>
